<compile_context>
chip_gen: v7x
topology: tpu7x:2x2x1
jax: 0.10.0
libtpu: 0.0.40
codegen_flags: <defaults>
</compile_context>

<pallas_src>
import functools

import numpy as np
import jax
import jax.numpy as jnp
from jax.experimental import pallas as pl
from jax.experimental.pallas import tpu as pltpu


def net_kernel(pat_ref, ww_ref, wb_ref, cw_ref, pool_ref, inv_ref, out_ref, *, bias):
    Bt, PP, CK2 = pat_ref.shape
    X = cw_ref.shape[1]
    Po2 = out_ref.shape[1]

    # --- whitening 1x1 conv (+ bias): bf16 operands, f32 accumulation (MXU) ---
    pat = pat_ref[...].reshape(Bt * PP, CK2)                       # (Bt*PP, CK2) bf16
    white = jnp.dot(pat, ww_ref[...],
                    preferred_element_type=jnp.float32) + wb_ref[...]

    # --- L2 normalization over channel axis (EUP rsqrt; eps avoids NaN for an
    #     all-zero patch -- torch would give NaN/inf there) --------------------
    inv = jax.lax.rsqrt(jnp.sum(white * white, axis=-1, keepdims=True) + 1e-30)
    # torch does .half() here -> bf16 on TPU
    white = (white * inv).astype(jnp.bfloat16)

    # --- second 1x1 conv with the fused [-W | W] weight => s_wide = [-s | s] --
    s_wide = jnp.dot(white, cw_ref[...],
                     preferred_element_type=jnp.float32)           # (Bt*PP, X)

    # --- heaviside(x, bias) == (x > bias).float() (repo semantics).  Compare in
    #     f32 (v5e has no bf16 VPU); 0/1 is exact in bf16 for the pool matmul. --
    hv = (s_wide > bias).astype(jnp.bfloat16)                      # (Bt*PP, X)

    # --- ceil_mode avg-pool: single block-diagonal 0/1 bf16 MXU matmul
    #     (M = Bt*Po2), then per-row clipped-window 1/count scale (f32, VPU). --
    pooled = jnp.dot(pool_ref[...], hv,
                     preferred_element_type=jnp.float32)           # (Bt*Po2, X)
    out_ref[...] = (pooled * inv_ref[...]).reshape(Bt, Po2, X)


def net_forward(x, conv_weight, whitening_operator, minus_whitened_patches_mean, *,
                conv_size, pool_size, pool_stride, bias=1.0):
    B, C, H, W = x.shape
    k = conv_size
    P = H - k + 1                                                  # n_patches_hw
    assert W - k + 1 == P
    PP = P * P
    CK2 = C * k * k
    D = whitening_operator.shape[0]
    n_conv = conv_weight.shape[0]

    # ---- F.unfold (im2col) in the XLA wrapper; bf16 halves HBM traffic -------
    cols = []
    for i in range(k):
        for j in range(k):
            cols.append(x[:, :, i:i + P, j:j + P])                 # (B, C, P, P)
    pat = jnp.stack(cols, axis=2).reshape(B, CK2, PP)
    pat = jnp.transpose(pat, (0, 2, 1)).astype(jnp.bfloat16)       # (B, PP, CK2)

    # Whitening weight/bias.  bf16 operands + f32 accumulation; result is
    # L2-normalized and cast to half right after, so this is accuracy-neutral
    # in practice (torch does f32 here, fp16 after).
    ww = jnp.transpose(whitening_operator.reshape(D, CK2), (1, 0)).astype(jnp.bfloat16)
    wb = minus_whitened_patches_mean.reshape(1, D).astype(jnp.float32)

    # Fused second-conv weight [-W | W]: one matmul gives [-s | s], so both
    # heaviside branches come from a single lane-dense compare.  Each half is
    # padded to a multiple of 64 so X = 2*n_pad is a multiple of 128.
    n_pad = ((n_conv + 63) // 64) * 64
    cw = jnp.transpose(conv_weight.reshape(n_conv, D), (1, 0)).astype(jnp.bfloat16)
    if n_pad != n_conv:
        cw = jnp.pad(cw, ((0, 0), (0, n_pad - n_conv)))
    cw_fused = jnp.concatenate([-cw, cw], axis=1)                  # (D, X)
    X = 2 * n_pad
    # NOTE: if bias <= 0 the zero padded lanes pool to 1; they are sliced off
    # below, so this is only (cheap) wasted work, never an error.

    # ceil_mode output spatial size (padding = 0), PyTorch shape rule.
    Po = -(-(P - pool_size) // pool_stride) + 1
    if (Po - 1) * pool_stride >= P:
        Po -= 1
    Po2 = Po * Po

    # Window membership (0/1, exact in bf16) and clipped-window 1/count
    # (matches PyTorch avg_pool2d ceil_mode=True, padding=0 divisor).
    mem_np = np.zeros((Po2, PP), np.float32)
    cnt_np = np.zeros((Po2, 1), np.float32)
    for oh in range(Po):
        h0 = oh * pool_stride
        h1 = min(h0 + pool_size, P)
        for ow in range(Po):
            w0 = ow * pool_stride
            w1 = min(w0 + pool_size, P)
            cnt_np[oh * Po + ow, 0] = 1.0 / float((h1 - h0) * (w1 - w0))
            for hh in range(h0, h1):
                for wc in range(w0, w1):
                    mem_np[oh * Po + ow, hh * P + wc] = 1.0

    # ---- VMEM-budgeted batch-tile selection ----------------------------------
    try:
        vmem_cap = int(getattr(pltpu.get_tpu_info(), "vmem_capacity_bytes", 64 << 20))
    except Exception:
        vmem_cap = 64 << 20                                        # conservative (v7x)
    vmem_limit = int(min(max(3 * vmem_cap // 5, 32 << 20), 96 << 20))
    budget = vmem_limit // 2                                       # estimate headroom

    def _lane(n):                      # lane (last-dim) padding to 128
        return ((n + 127) // 128) * 128

    def _sub(n, m):                    # sublane padding (8 f32 / 16 bf16)
        return ((n + m - 1) // m) * m

    def est_bytes(bt):
        b = 0
        b += 2 * bt * _sub(PP, 16) * _lane(CK2) * 2        # patches (bf16, 2-buf)
        b += 2 * _sub(CK2, 16) * _lane(D) * 2              # whitening weight
        b += 2 * _sub(1, 8) * _lane(D) * 4                 # whitening bias
        b += 2 * _sub(D, 16) * _lane(X) * 2                # fused conv weight
        b += 2 * _sub(bt * Po2, 16) * _lane(bt * PP) * 2   # block-diag pool matrix
        b += 2 * _sub(bt * Po2, 8) * _lane(1) * 4          # 1/count column
        b += 2 * bt * _sub(Po2, 8) * _lane(X) * 4          # output (f32, 2-buf)
        b += bt * PP * _lane(D) * 4                        # whitened (f32)
        b += bt * PP * _lane(X) * 4                        # s_wide (f32)
        b += bt * PP * _lane(X) * 2                        # hv (bf16)
        b += bt * Po2 * _lane(X) * 4                       # pooled (f32)
        return b

    feasible = [bt for bt in range(1, min(B, 8) + 1) if est_bytes(bt) <= budget] or [1]
    Bt = max(feasible)
    if B >= 2:
        # Prefer >= 2 grid steps so v7x's second TensorCore gets work, as long
        # as the whitening matmul M = Bt*PP stays reasonably large.
        multi = [bt for bt in feasible if -(-B // bt) >= 2]
        if multi:
            good = [bt for bt in multi if bt * PP >= 256] or multi
            Bt = max(good)
    B_pad = -(-B // Bt) * Bt
    grid = (B_pad // Bt,)
    if B_pad != B:
        # zero-padded batch rows: harmless (eps in rsqrt avoids NaN), sliced off
        pat = jnp.pad(pat, ((0, B_pad - B), (0, 0), (0, 0)))

    pool_bd = jnp.asarray(np.kron(np.eye(Bt, dtype=np.float32), mem_np),
                          dtype=jnp.bfloat16)                      # (Bt*Po2, Bt*PP)
    inv_cnt = jnp.asarray(np.tile(cnt_np, (Bt, 1)))                # (Bt*Po2, 1) f32

    kernel = functools.partial(net_kernel, bias=float(bias))

    out = pl.pallas_call(
        kernel,
        out_shape=jax.ShapeDtypeStruct((B_pad, Po2, X), jnp.float32),
        grid_spec=pltpu.PrefetchScalarGridSpec(
            num_scalar_prefetch=0,
            grid=grid,
            in_specs=[
                pl.BlockSpec((Bt, PP, CK2), lambda b: (b, 0, 0)),      # patches
                pl.BlockSpec((CK2, D), lambda b: (0, 0)),              # whitening W
                pl.BlockSpec((1, D), lambda b: (0, 0)),                # whitening b
                pl.BlockSpec((D, X), lambda b: (0, 0)),                # fused conv W
                pl.BlockSpec((Bt * Po2, Bt * PP), lambda b: (0, 0)),   # pool matrix
                pl.BlockSpec((Bt * Po2, 1), lambda b: (0, 0)),         # 1/count
            ],
            out_specs=pl.BlockSpec((Bt, Po2, X), lambda b: (b, 0, 0)),
        ),
        compiler_params=pltpu.CompilerParams(
            dimension_semantics=("parallel",),
            vmem_limit_bytes=vmem_limit),
    )(pat, ww, wb, cw_fused, pool_bd, inv_cnt)

    # split fused lanes, drop padded batch/channels, back to torch NCHW layout
    out = out[:B].reshape(B, Po, Po, X)
    out1 = jnp.transpose(out[..., :n_conv], (0, 3, 1, 2))
    out2 = jnp.transpose(out[..., n_pad:n_pad + n_conv], (0, 3, 1, 2))
    return out1, out2


if __name__ == "__main__":
    key = jax.random.PRNGKey(0)

    # Small shapes consistent with the module's forward.
    B, C, spatial_size = 2, 3, 10
    conv_size = 3                        # spatialsize_convolution
    n_channel_convolution = 32
    pool_size, pool_stride = 3, 2        # spatialsize_avg_pooling / stride_avg_pooling
    bias = 0.1
    CK2 = C * conv_size * conv_size      # 27
    D = CK2                              # whitening keeps patch dimension

    kx, kw, kwo, km = jax.random.split(key, 4)
    x = jax.random.uniform(kx, (B, C, spatial_size, spatial_size), jnp.float32)
    conv_weight = 0.5 * jax.random.normal(kw, (n_channel_convolution, D, 1, 1), jnp.float32)
    whitening_operator = 0.3 * jax.random.normal(kwo, (D, CK2, 1, 1), jnp.float32)
    minus_whitened_patches_mean = 0.1 * jax.random.normal(km, (D,), jnp.float32)

    out1, out2 = net_forward(
        x, conv_weight, whitening_operator, minus_whitened_patches_mean,
        conv_size=conv_size, pool_size=pool_size, pool_stride=pool_stride, bias=bias)
    jax.block_until_ready((out1, out2))

    P = spatial_size - conv_size + 1             # 8
    Po = -(-(P - pool_size) // pool_stride) + 1  # ceil_mode -> 4
    if (Po - 1) * pool_stride >= P:
        Po -= 1
    assert out1.shape == (B, n_channel_convolution, Po, Po)
    assert out2.shape == (B, n_channel_convolution, Po, Po)
    assert bool(jnp.all(jnp.isfinite(out1))) and bool(jnp.all(jnp.isfinite(out2)))
    # pooled heaviside outputs must lie in [0, 1]
    assert bool(jnp.all((out1 >= 0.0) & (out1 <= 1.0)))
    assert bool(jnp.all((out2 >= 0.0) & (out2 <= 1.0)))
    # bias > 0 -> the two heaviside branches are mutually exclusive per element,
    # so the pooled branches sum to at most 1.
    assert bool(jnp.all(out1 + out2 <= 1.0 + 1e-5))
    print("KERNEL_OK")
</pallas_src>

<mosaic_0001>
module attributes {stable_mosaic.version = 11 : i64} {
  func.func @net_kernel(%arg0: i32, %arg1: memref<1x64x27xbf16, #tpu.memory_space<vmem>>, %arg2: memref<27x27xbf16, #tpu.memory_space<vmem>>, %arg3: memref<1x27xf32, #tpu.memory_space<vmem>>, %arg4: memref<27x128xbf16, #tpu.memory_space<vmem>>, %arg5: memref<16x64xbf16, #tpu.memory_space<vmem>>, %arg6: memref<16x1xf32, #tpu.memory_space<vmem>>, %arg7: memref<1x16x128xf32, #tpu.memory_space<vmem>>) attributes {dimension_semantics = [#tpu.dimension_semantics<parallel>], iteration_bounds = array<i64: 2>, scalar_prefetch = 0 : i64, scratch_operands = 0 : i64, tpu.core_type = #tpu.core_type<tc>, window_params = [{transform_indices = @transform_0, window_bounds = array<i64: 1, 64, 27>}, {pipeline_mode = #tpu.pipeline_mode<synchronous>, transform_indices = @transform_1, window_bounds = array<i64: 27, 27>}, {pipeline_mode = #tpu.pipeline_mode<synchronous>, transform_indices = @transform_2, window_bounds = array<i64: 1, 27>}, {pipeline_mode = #tpu.pipeline_mode<synchronous>, transform_indices = @transform_3, window_bounds = array<i64: 27, 128>}, {pipeline_mode = #tpu.pipeline_mode<synchronous>, transform_indices = @transform_4, window_bounds = array<i64: 16, 64>}, {pipeline_mode = #tpu.pipeline_mode<synchronous>, transform_indices = @transform_5, window_bounds = array<i64: 16, 1>}, {transform_indices = @transform_6, window_bounds = array<i64: 1, 16, 128>}]} {
    %c0 = arith.constant 0 : index
    %c0_0 = arith.constant 0 : index
    %c0_1 = arith.constant 0 : index
    %0 = vector.load %arg1[%c0, %c0_0, %c0_1] : memref<1x64x27xbf16, #tpu.memory_space<vmem>>, vector<1x64x27xbf16>
    %1 = vector.shape_cast %0 : vector<1x64x27xbf16> to vector<64x27xbf16>
    %c0_2 = arith.constant 0 : index
    %c0_3 = arith.constant 0 : index
    %2 = vector.load %arg2[%c0_2, %c0_3] : memref<27x27xbf16, #tpu.memory_space<vmem>>, vector<27x27xbf16>
    %cst = arith.constant dense<0.000000e+00> : vector<64x27xf32>
    %3 = tpu.matmul %1, %2, %cst {dimension_numbers = #tpu.dot_dimension_numbers<[1], [0], [0], [1], [0, 0, 1, 1], [], []>} : vector<64x27xbf16>, vector<27x27xbf16>, vector<64x27xf32> -> vector<64x27xf32>
    %c0_4 = arith.constant 0 : index
    %c0_5 = arith.constant 0 : index
    %4 = vector.load %arg3[%c0_4, %c0_5] : memref<1x27xf32, #tpu.memory_space<vmem>>, vector<1x27xf32>
    %5 = vector.broadcast %4 : vector<1x27xf32> to vector<64x27xf32>
    %6 = arith.addf %3, %5 : vector<64x27xf32>
    %7 = arith.mulf %6, %6 : vector<64x27xf32>
    %cst_6 = arith.constant dense<0.000000e+00> : vector<64xf32>
    %8 = vector.multi_reduction <add>, %7, %cst_6 [1] : vector<64x27xf32> to vector<64xf32>
    %9 = vector.shape_cast %8 : vector<64xf32> to vector<64x1xf32>
    %cst_7 = arith.constant 1.000000e-30 : f32
    %10 = vector.broadcast %cst_7 : f32 to vector<64x1xf32>
    %11 = arith.addf %9, %10 : vector<64x1xf32>
    %12 = math.rsqrt %11 : vector<64x1xf32>
    %13 = vector.broadcast %12 : vector<64x1xf32> to vector<64x27xf32>
    %14 = arith.mulf %6, %13 : vector<64x27xf32>
    %15 = arith.truncf %14 : vector<64x27xf32> to vector<64x27xbf16>
    %c0_8 = arith.constant 0 : index
    %c0_9 = arith.constant 0 : index
    %16 = vector.load %arg4[%c0_8, %c0_9] : memref<27x128xbf16, #tpu.memory_space<vmem>>, vector<27x128xbf16>
    %cst_10 = arith.constant dense<0.000000e+00> : vector<64x128xf32>
    %17 = tpu.matmul %15, %16, %cst_10 {dimension_numbers = #tpu.dot_dimension_numbers<[1], [0], [0], [1], [0, 0, 1, 1], [], []>} : vector<64x27xbf16>, vector<27x128xbf16>, vector<64x128xf32> -> vector<64x128xf32>
    %cst_11 = arith.constant 1.000000e-01 : f32
    %18 = vector.broadcast %cst_11 : f32 to vector<64x128xf32>
    %19 = arith.cmpf ogt, %17, %18 : vector<64x128xf32>
    %20 = arith.extui %19 : vector<64x128xi1> to vector<64x128xi32>
    %21 = arith.sitofp %20 : vector<64x128xi32> to vector<64x128xf32>
    %22 = arith.truncf %21 : vector<64x128xf32> to vector<64x128xbf16>
    %c0_12 = arith.constant 0 : index
    %c0_13 = arith.constant 0 : index
    %23 = vector.load %arg5[%c0_12, %c0_13] : memref<16x64xbf16, #tpu.memory_space<vmem>>, vector<16x64xbf16>
    %cst_14 = arith.constant dense<0.000000e+00> : vector<16x128xf32>
    %24 = tpu.matmul %23, %22, %cst_14 {dimension_numbers = #tpu.dot_dimension_numbers<[1], [0], [0], [1], [0, 0, 1, 1], [], []>} : vector<16x64xbf16>, vector<64x128xbf16>, vector<16x128xf32> -> vector<16x128xf32>
    %c0_15 = arith.constant 0 : index
    %c0_16 = arith.constant 0 : index
    %25 = vector.load %arg6[%c0_15, %c0_16] : memref<16x1xf32, #tpu.memory_space<vmem>>, vector<16x1xf32>
    %26 = vector.broadcast %25 : vector<16x1xf32> to vector<16x128xf32>
    %27 = arith.mulf %24, %26 : vector<16x128xf32>
    %28 = vector.shape_cast %27 : vector<16x128xf32> to vector<1x16x128xf32>
    %c0_17 = arith.constant 0 : index
    %c0_18 = arith.constant 0 : index
    %c0_19 = arith.constant 0 : index
    %29 = vector.load %arg7[%c0_17, %c0_18, %c0_19] : memref<1x16x128xf32, #tpu.memory_space<vmem>>, vector<1x16x128xf32>
    tpu.vector_store %arg7[%c0_17, %c0_18, %c0_19], %28 {strides = array<i32>} : memref<1x16x128xf32, #tpu.memory_space<vmem>>, vector<1x16x128xf32>,
    return
  }
  func.func @transform_0(%arg0: i32) -> (i32, i32, i32) {
    %c0_i32 = arith.constant 0 : i32
    %c0_i32_0 = arith.constant 0 : i32
    %c0_i32_1 = arith.constant 0 : i32
    return %arg0, %c0_i32, %c0_i32_0 : i32, i32, i32
  }
  func.func @transform_1(%arg0: i32) -> (i32, i32) {
    %c0_i32 = arith.constant 0 : i32
    %c0_i32_0 = arith.constant 0 : i32
    %c0_i32_1 = arith.constant 0 : i32
    return %c0_i32, %c0_i32_0 : i32, i32
  }
  func.func @transform_2(%arg0: i32) -> (i32, i32) {
    %c0_i32 = arith.constant 0 : i32
    %c0_i32_0 = arith.constant 0 : i32
    %c0_i32_1 = arith.constant 0 : i32
    return %c0_i32, %c0_i32_0 : i32, i32
  }
  func.func @transform_3(%arg0: i32) -> (i32, i32) {
    %c0_i32 = arith.constant 0 : i32
    %c0_i32_0 = arith.constant 0 : i32
    %c0_i32_1 = arith.constant 0 : i32
    return %c0_i32, %c0_i32_0 : i32, i32
  }
  func.func @transform_4(%arg0: i32) -> (i32, i32) {
    %c0_i32 = arith.constant 0 : i32
    %c0_i32_0 = arith.constant 0 : i32
    %c0_i32_1 = arith.constant 0 : i32
    return %c0_i32, %c0_i32_0 : i32, i32
  }
  func.func @transform_5(%arg0: i32) -> (i32, i32) {
    %c0_i32 = arith.constant 0 : i32
    %c0_i32_0 = arith.constant 0 : i32
    %c0_i32_1 = arith.constant 0 : i32
    return %c0_i32, %c0_i32_0 : i32, i32
  }
  func.func @transform_6(%arg0: i32) -> (i32, i32, i32) {
    %c0_i32 = arith.constant 0 : i32
    %c0_i32_0 = arith.constant 0 : i32
    %c0_i32_1 = arith.constant 0 : i32
    return %arg0, %c0_i32, %c0_i32_0 : i32, i32, i32
  }
}

</mosaic_0001>

<llo_original>
// kernel: tpu_custom_call.1
$region0: #{tpu_custom_call.1}
  #allocation0 [shape = 'u32[]', space=smem, size = 0x4, offset = 0x4, fixed_abs, tag = 'smem constant byte address 0x4 - core index']
  #allocation1 [shape = 'u32[144,128]{1,0:T(1,128)}', space=vmem, size = 0x12000, scoped, tag = 'internal scratch']
  %s0 = inlined_call_operand.vmem [shape: bf16[2,64,27], index: 0, kind: input, shape index: {}]
  %s1 = inlined_call_operand.vmem [shape: bf16[27,27], index: 1, kind: input, shape index: {}]
  %s2 = inlined_call_operand.vmem [shape: f32[1,27], index: 2, kind: input, shape index: {}]
  %s3 = inlined_call_operand.vmem [shape: bf16[27,128], index: 3, kind: input, shape index: {}]
  %s4 = inlined_call_operand.vmem [shape: bf16[16,64], index: 4, kind: input, shape index: {}]
  %s5 = inlined_call_operand.vmem [shape: f32[16,1], index: 5, kind: input, shape index: {}]
  %s6 = inlined_call_operand.hbm [shape: f32[2,16,128], index: 6, kind: output, shape index: {}]
  %s7 = sld [smem:[#allocation0]]
  $region57: #{tpu_custom_call.1} parent=0
    _
  %s9 = ssub.s32 1, %s7
  %s10 = scalar_select 0, %s9, %s7
  $region1: #{tpu_custom_call.1} parent=0
    #allocation2 [shape = 'u8[16384]{0}', space=vmem, size = 0x4000, scoped, tag = 'output window, operand 0']
    #allocation3 [shape = 's32[2]{0}', space=sflag, size = 0x8, scoped, tag = 'scoped memory for tpu_custom_call.1']
    %11 = vsyncpa [#allocation3], 0
    %s12 = scalar_lea.sflag [#allocation3], 1
    %13 = vsyncpa %s12, 0
    loop: start=0, step=1, limit=4
    $region2: #{tpu_custom_call.1} parent=1 // loop_pre_header
      _
    $region3: #{tpu_custom_call.1} parent=1 // loop_header
      %s15 = sphi 0, %s19
      %p16 = scmp.ge.s32.totalorder %s15, 4
      %s25 = sphi 0, %s27
      %s28 = sphi 0, %s25
      %s29 = sphi 0, %s28
      %s45 = sphi 0, %s29
      %s49 = sphi 0, %s49
      %s51 = sphi 0, %s49
      %s52 = sphi 0, %s51
      %s66 = sphi 0, %s52
      %s70 = sphi 0, %s70
      %s72 = sphi 0, %s70
      %s73 = sphi 0, %s72
      %s87 = sphi 0, %s73
      %s91 = sphi 0, %s91
      %s93 = sphi 0, %s91
      %s94 = sphi 0, %s93
      %s108 = sphi 0, %s94
      %s112 = sphi 0, %s112
      %s114 = sphi 0, %s112
      %s115 = sphi 0, %s114
      %s129 = sphi 0, %s115
      %s133 = sphi 0, %s133
      %s135 = sphi 0, %s133
      %s136 = sphi 0, %s135
      %s150 = sphi 0, %s136
      %s156 = sphi 0, %s158
      %s159 = sphi 0, %s156
      %s160 = sphi 0, %s159
      %s176 = sphi 0, %s160
    $region4: #{tpu_custom_call.1} parent=1 // loop_header_branch
      %18 = sbr.rel (%p16) target = $region8
    $region5: #{tpu_custom_call.1} parent=1 // loop_body
      %s20 = ssub.s32 %s15, 1
      %s21 = ssub.s32 %s15, 2
      %s22 = sadd.s32 %s15, 1
      %s23 = ssub.s32 %s15, %s22
      %p24 = scmp.eq.s32.totalorder %s23, 0
      %s26 = sadd.s32 %s25, 1
      %s27 = scalar_select %p24, %s25, %s26
      %p30 = pneg %p24
      %p31 = scmp.eq.s32.totalorder %s15, 1
      %p32 = por %p30, %p31
      %p33 = scmp.ne.s32.totalorder %s25, %s28
      %p34 = scmp.eq.s32.totalorder %s15, 0
      %p35 = por %p33, %p34
      %p36 = scmp.ne.s32.totalorder %s25, %s28
      %p37 = scmp.eq.s32.totalorder %s20, 1
      %p38 = por %p36, %p37
      %p39 = scmp.ne.s32.totalorder %s28, %s29
      %p40 = scmp.eq.s32.totalorder %s20, 0
      %p41 = por %p39, %p40
      %p42 = scmp.ne.s32.totalorder %s28, %s29
      %p43 = scmp.eq.s32.totalorder %s21, 1
      %p44 = por %p42, %p43
      %p46 = scmp.ne.s32.totalorder %s29, %s45
      %p47 = scmp.eq.s32.totalorder %s21, 0
      %p48 = por %p46, %p47
      %s50 = sadd.s32 %s49, 1
      %p53 = scmp.eq.s32.totalorder %s15, 1
      %p54 = scmp.ne.s32.totalorder %s49, %s51
      %p55 = scmp.eq.s32.totalorder %s15, 0
      %p56 = por %p54, %p55
      %p57 = scmp.ne.s32.totalorder %s49, %s51
      %p58 = scmp.eq.s32.totalorder %s20, 1
      %p59 = por %p57, %p58
      %p60 = scmp.ne.s32.totalorder %s51, %s52
      %p61 = scmp.eq.s32.totalorder %s20, 0
      %p62 = por %p60, %p61
      %p63 = scmp.ne.s32.totalorder %s51, %s52
      %p64 = scmp.eq.s32.totalorder %s21, 1
      %p65 = por %p63, %p64
      %p67 = scmp.ne.s32.totalorder %s52, %s66
      %p68 = scmp.eq.s32.totalorder %s21, 0
      %p69 = por %p67, %p68
      %s71 = sadd.s32 %s70, 1
      %p74 = scmp.eq.s32.totalorder %s15, 1
      %p75 = scmp.ne.s32.totalorder %s70, %s72
      %p76 = scmp.eq.s32.totalorder %s15, 0
      %p77 = por %p75, %p76
      %p78 = scmp.ne.s32.totalorder %s70, %s72
      %p79 = scmp.eq.s32.totalorder %s20, 1
      %p80 = por %p78, %p79
      %p81 = scmp.ne.s32.totalorder %s72, %s73
      %p82 = scmp.eq.s32.totalorder %s20, 0
      %p83 = por %p81, %p82
      %p84 = scmp.ne.s32.totalorder %s72, %s73
      %p85 = scmp.eq.s32.totalorder %s21, 1
      %p86 = por %p84, %p85
      %p88 = scmp.ne.s32.totalorder %s73, %s87
      %p89 = scmp.eq.s32.totalorder %s21, 0
      %p90 = por %p88, %p89
      %s92 = sadd.s32 %s91, 1
      %p95 = scmp.eq.s32.totalorder %s15, 1
      %p96 = scmp.ne.s32.totalorder %s91, %s93
      %p97 = scmp.eq.s32.totalorder %s15, 0
      %p98 = por %p96, %p97
      %p99 = scmp.ne.s32.totalorder %s91, %s93
      %p100 = scmp.eq.s32.totalorder %s20, 1
      %p101 = por %p99, %p100
      %p102 = scmp.ne.s32.totalorder %s93, %s94
      %p103 = scmp.eq.s32.totalorder %s20, 0
      %p104 = por %p102, %p103
      %p105 = scmp.ne.s32.totalorder %s93, %s94
      %p106 = scmp.eq.s32.totalorder %s21, 1
      %p107 = por %p105, %p106
      %p109 = scmp.ne.s32.totalorder %s94, %s108
      %p110 = scmp.eq.s32.totalorder %s21, 0
      %p111 = por %p109, %p110
      %s113 = sadd.s32 %s112, 1
      %p116 = scmp.eq.s32.totalorder %s15, 1
      %p117 = scmp.ne.s32.totalorder %s112, %s114
      %p118 = scmp.eq.s32.totalorder %s15, 0
      %p119 = por %p117, %p118
      %p120 = scmp.ne.s32.totalorder %s112, %s114
      %p121 = scmp.eq.s32.totalorder %s20, 1
      %p122 = por %p120, %p121
      %p123 = scmp.ne.s32.totalorder %s114, %s115
      %p124 = scmp.eq.s32.totalorder %s20, 0
      %p125 = por %p123, %p124
      %p126 = scmp.ne.s32.totalorder %s114, %s115
      %p127 = scmp.eq.s32.totalorder %s21, 1
      %p128 = por %p126, %p127
      %p130 = scmp.ne.s32.totalorder %s115, %s129
      %p131 = scmp.eq.s32.totalorder %s21, 0
      %p132 = por %p130, %p131
      %s134 = sadd.s32 %s133, 1
      %p137 = scmp.eq.s32.totalorder %s15, 1
      %p138 = scmp.ne.s32.totalorder %s133, %s135
      %p139 = scmp.eq.s32.totalorder %s15, 0
      %p140 = por %p138, %p139
      %p141 = scmp.ne.s32.totalorder %s133, %s135
      %p142 = scmp.eq.s32.totalorder %s20, 1
      %p143 = por %p141, %p142
      %p144 = scmp.ne.s32.totalorder %s135, %s136
      %p145 = scmp.eq.s32.totalorder %s20, 0
      %p146 = por %p144, %p145
      %p147 = scmp.ne.s32.totalorder %s135, %s136
      %p148 = scmp.eq.s32.totalorder %s21, 1
      %p149 = por %p147, %p148
      %p151 = scmp.ne.s32.totalorder %s136, %s150
      %p152 = scmp.eq.s32.totalorder %s21, 0
      %p153 = por %p151, %p152
      %s154 = ssub.s32 %s15, %s22
      %p155 = scmp.eq.s32.totalorder %s154, 0
      %s157 = sadd.s32 %s156, 1
      %s158 = scalar_select %p155, %s156, %s157
      %p161 = pneg %p155
      %p162 = scmp.eq.s32.totalorder %s15, 1
      %p163 = por %p161, %p162
      %p164 = scmp.ne.s32.totalorder %s156, %s159
      %p165 = scmp.eq.s32.totalorder %s15, 0
      %p166 = por %p164, %p165
      %p167 = scmp.ne.s32.totalorder %s156, %s159
      %p168 = scmp.eq.s32.totalorder %s20, 1
      %p169 = por %p167, %p168
      %p170 = scmp.ne.s32.totalorder %s159, %s160
      %p171 = scmp.eq.s32.totalorder %s20, 0
      %p172 = por %p170, %p171
      %p173 = scmp.ne.s32.totalorder %s159, %s160
      %p174 = scmp.eq.s32.totalorder %s21, 1
      %p175 = por %p173, %p174
      %p177 = scmp.ne.s32.totalorder %s160, %s176
      %p178 = scmp.eq.s32.totalorder %s21, 0
      %p179 = por %p177, %p178
      %p180 = scmp.le.s32.totalorder 1, %s15
      %p181 = scmp.lt.s32.totalorder %s15, 3
      %p182 = pnand %p180, %p181
      %p183 = pneg %p182
      // Predicated region
      $region9: #{tpu_custom_call.1} parent=5 // pred_check
        _
      $region10: #{tpu_custom_call.1} parent=5 // pred_check_branch
        %185 = sbr.rel (%p182) target = $region12
      $region11: #{tpu_custom_call.1} parent=5 // pred_region
        %s186 = ssub.s32 %s15, 1
        // Predicated region
        $region13: #{tpu_custom_call.1} parent=11 // pred_check
          %p187 = pneg %p62
        $region14: #{tpu_custom_call.1} parent=11 // pred_check_branch
          %189 = sbr.rel (%p187) target = $region16
        $region15: #{tpu_custom_call.1} parent=11 // pred_region
          _
        $region16: #{tpu_custom_call.1} parent=11 // pred_fallthru
          _
        // Predicated region
        $region17: #{tpu_custom_call.1} parent=11 // pred_check
          %p190 = pneg %p83
        $region18: #{tpu_custom_call.1} parent=11 // pred_check_branch
          %192 = sbr.rel (%p190) target = $region20
        $region19: #{tpu_custom_call.1} parent=11 // pred_region
          _
        $region20: #{tpu_custom_call.1} parent=11 // pred_fallthru
          _
        // Predicated region
        $region21: #{tpu_custom_call.1} parent=11 // pred_check
          %p193 = pneg %p104
        $region22: #{tpu_custom_call.1} parent=11 // pred_check_branch
          %195 = sbr.rel (%p193) target = $region24
        $region23: #{tpu_custom_call.1} parent=11 // pred_region
          _
        $region24: #{tpu_custom_call.1} parent=11 // pred_fallthru
          _
        // Predicated region
        $region25: #{tpu_custom_call.1} parent=11 // pred_check
          %p196 = pneg %p125
        $region26: #{tpu_custom_call.1} parent=11 // pred_check_branch
          %198 = sbr.rel (%p196) target = $region28
        $region27: #{tpu_custom_call.1} parent=11 // pred_region
          _
        $region28: #{tpu_custom_call.1} parent=11 // pred_fallthru
          _
        // Predicated region
        $region29: #{tpu_custom_call.1} parent=11 // pred_check
          %p199 = pneg %p146
        $region30: #{tpu_custom_call.1} parent=11 // pred_check_branch
          %201 = sbr.rel (%p199) target = $region32
        $region31: #{tpu_custom_call.1} parent=11 // pred_region
          _
        $region32: #{tpu_custom_call.1} parent=11 // pred_fallthru
          _
      $region12: #{tpu_custom_call.1} parent=5 // pred_fallthru
        _
      %p202 = scmp.lt.s32.totalorder %s15, 2
      // Predicated region
      $region33: #{tpu_custom_call.1} parent=5 // pred_check
        %p203 = pneg %p202
      $region34: #{tpu_custom_call.1} parent=5 // pred_check_branch
        %205 = sbr.rel (%p203) target = $region36
      $region35: #{tpu_custom_call.1} parent=5 // pred_region
        // Predicated region
        $region37: #{tpu_custom_call.1} parent=35 // pred_check
          %p206 = pneg %p35
        $region38: #{tpu_custom_call.1} parent=35 // pred_check_branch
          %208 = sbr.rel (%p206) target = $region40
        $region39: #{tpu_custom_call.1} parent=35 // pred_region
          %p209 = scmp.lt.s32.totalorder %s15, 1
          %s210 = scalar_select %p209, %s15, 1
          %s211 = smul.addr %s210, 8
          %s212 = smul.addr %s211, 4
          %s213 = scalar_lea.vmem %s0, %s212
        $region40: #{tpu_custom_call.1} parent=35 // pred_fallthru
          _
      $region36: #{tpu_custom_call.1} parent=5 // pred_fallthru
        _
      %p214 = scmp.le.s32.totalorder 1, %s15
      %p215 = scmp.lt.s32.totalorder %s15, 3
      %p216 = pnand %p214, %p215
      %p217 = pneg %p216
      // Predicated region
      $region41: #{tpu_custom_call.1} parent=5 // pred_check
        _
      $region42: #{tpu_custom_call.1} parent=5 // pred_check_branch
        %219 = sbr.rel (%p216) target = $region44
      $region43: #{tpu_custom_call.1} parent=5 // pred_region
        %s220 = ssub.s32 %s15, 1
        %p221 = scmp.lt.s32.totalorder %s20, 1
        %s222 = scalar_select %p221, %s20, 1
        %s223 = smul.addr %s222, 8
        %s224 = smul.addr %s223, 4
        %s225 = scalar_lea.vmem %s0, %s224
        %p226 = pneg %p41
        %p227 = pneg %p38
        %p228 = pneg %p62
        %p229 = pneg %p59
        %p230 = pneg %p83
        %p231 = pneg %p80
        %p232 = pneg %p104
        %p233 = pneg %p101
        %p234 = pneg %p125
        %p235 = pneg %p122
        %p236 = pneg %p146
        %p237 = pneg %p143
        %p238 = pneg %p172
        %p239 = pneg %p169
        %s240 = sand.u32 %s159, 1
        %s241 = scalar_lea.sflag [#allocation3], %s240
        %s242 = sand.u32 %s159, 1
        %s243 = smul.addr %s242, 16
        %s244 = scalar_lea.vmem [#allocation2], %s243
        %p245 = scmp.lt.s32.totalorder %s20, 1
        %s246 = scalar_select %p245, %s20, 1
        %s247 = smul.addr %s246, 8
        %s248 = smul.addr %s247, 4
        %s249 = scalar_lea.vmem %s0, %s248
        %v251 = vld [vmem:[%s249] sm:$0xf]
        %v252 = vld [vmem:[%s249 + $0x4] sm:$0xf]
        %v253 = vld [vmem:[%s249 + $0x8] sm:$0xf]
        %v254 = vld [vmem:[%s249 + $0xc] sm:$0xf]
        %v255 = vld [vmem:[%s249 + $0x10] sm:$0xf]
        %v256 = vld [vmem:[%s249 + $0x14] sm:$0xf]
        %v257 = vld [vmem:[%s249 + $0x18] sm:$0xf]
        %v258 = vld [vmem:[%s249 + $0x1c] sm:$0xf]
        %v259 = vld [vmem:[%s1] sm:$0xf]
        %v260 = vld [vmem:[%s1 + $0x4] sm:$0xf]
        %v261 = vld [vmem:[%s1 + $0x8] sm:$0xf]
        %v262 = vld [vmem:[%s1 + $0xc] sm:$0x3]
        %v263 = vld [vmem:[%s2] sm:$0x1]
        %v265 = vlaneseq
        %v266 = vshrl.u32 %v265, 7
        %v267 = vsub.s32 0, %v266
        %v268 = vrot.slane %v263, %v267
        %v278 = vunpack.c.l.b16 %v251
        %v279 = vunpack.c.l.b16 %v252
        %v280 = vunpack.c.l.b16 %v253
        %v281 = vunpack.c.l.b16 %v254
        %v282 = vunpack.c.l.b16 %v255
        %v283 = vunpack.c.l.b16 %v256
        %v284 = vunpack.c.l.b16 %v257
        %v285 = vunpack.c.l.b16 %v258
        %v286 = vpack.c.b16 %v279, %v278
        %v287 = vpack.c.b16 %v281, %v280
        %v288 = vpack.c.b16 %v283, %v282
        %v289 = vpack.c.b16 %v285, %v284
        %v294 = vunpack.c.l.b16 %v259
        %v295 = vunpack.c.l.b16 %v260
        %v296 = vunpack.c.l.b16 %v261
        %v297 = vunpack.c.l.b16 %v262
        %v298 = vpack.c.b16 %v295, %v294
        %v299 = vpack.c.b16 %v297, %v296
        %vm301 = vcmask 220160
        %v303 = vsel %vm301, %v286, 0
        %v306 = vsel %vm301, %v287, 0
        %v309 = vsel %vm301, %v288, 0
        %v312 = vsel %vm301, %v289, 0
        %vm314 = vcmask 1044480
        %vm315 = vcmask 1045504
        %v316 = vsel %vm314, 4294967295, 65535
        %v317 = vsel %vm315, %v316, 0
        %v319 = vand.u32 %v299, %v317
        %321 = vmatprep.subr.bf16.mxu0 0
        %322 = vmatpush1.bf16.msra.mxu0 %v298
        %323 = vmatprep.subr.bf16.mxu0 0
        %324 = vmatpush1.bf16.msra.mxu0 %v319
        %325 = vmatprep.subr.bf16.mxu0 0
        %326 = vmatpush1.bf16.msra.mxu0 0
        %327 = vmatprep.subr.bf16.mxu0 0
        %328 = vmatpush1.bf16.msra.mxu0 0
        %329 = vmatprep.subr.bf16.mxu0 0
        %330 = vmatpush1.bf16.msra.mxu0 0
        %331 = vmatprep.subr.bf16.mxu0 0
        %332 = vmatpush1.bf16.msra.mxu0 0
        %333 = vmatprep.subr.bf16.mxu0 0
        %334 = vmatpush1.bf16.msra.mxu0 0
        %335 = vmatprep.subr.bf16.mxu0 0
        %336 = vmatpush1.bf16.msra.mxu0 0
        %337 = vmatprep.subr.bf16.mxu0 0
        %338 = vmatpush1.bf16.msra.mxu0 0
        %339 = vmatprep.subr.bf16.mxu0 0
        %340 = vmatpush1.bf16.msra.mxu0 0
        %341 = vmatprep.subr.bf16.mxu0 0
        %342 = vmatpush1.bf16.msra.mxu0 0
        %343 = vmatprep.subr.bf16.mxu0 0
        %344 = vmatpush1.bf16.msra.mxu0 0
        %345 = vmatprep.subr.bf16.mxu0 0
        %346 = vmatpush1.bf16.msra.mxu0 0
        %347 = vmatprep.subr.bf16.mxu0 0
        %348 = vmatpush1.bf16.msra.mxu0 0
        %349 = vmatprep.subr.bf16.mxu0 0
        %350 = vmatpush1.bf16.msra.mxu0 0
        %351 = vmatprep.subr.bf16.mxu0 0
        %352 = vmatpush1.bf16.msra.mxu0 0
        %353 = vmatprep.mubr.bf16.mxu0 0
        %354 = vmatmul.mubr.bf16.gmra.mrb[0].mxu0 %v303
        %v355 = vpop.f32.mrb[0].mxu0
        %v356 = vadd.f32 %v268, %v355
        %v357 = vpop.f32.mrb[0].mxu0
        %v358 = vpop.f32.mrb[0].mxu0
        %v359 = vadd.f32 %v268, %v358
        %v360 = vpop.f32.mrb[0].mxu0
        %361 = vmatprep.mubr.bf16.mxu0 0
        %362 = vmatmul.mubr.bf16.gmra.mrb[0].mxu0 %v306
        %v363 = vpop.f32.mrb[0].mxu0
        %v364 = vadd.f32 %v268, %v363
        %v365 = vpop.f32.mrb[0].mxu0
        %v366 = vpop.f32.mrb[0].mxu0
        %v367 = vadd.f32 %v268, %v366
        %v368 = vpop.f32.mrb[0].mxu0
        %369 = vmatprep.mubr.bf16.mxu0 0
        %370 = vmatmul.mubr.bf16.gmra.mrb[0].mxu0 %v309
        %v371 = vpop.f32.mrb[0].mxu0
        %v372 = vadd.f32 %v268, %v371
        %v373 = vpop.f32.mrb[0].mxu0
        %v374 = vpop.f32.mrb[0].mxu0
        %v375 = vadd.f32 %v268, %v374
        %v376 = vpop.f32.mrb[0].mxu0
        %377 = vmatprep.mubr.bf16.mxu0 0
        %378 = vmatmul.mubr.bf16.gmra.mrb[0].mxu0 %v312
        %v379 = vpop.f32.mrb[0].mxu0
        %v380 = vadd.f32 %v268, %v379
        %v381 = vpop.f32.mrb[0].mxu0
        %v382 = vpop.f32.mrb[0].mxu0
        %v383 = vadd.f32 %v268, %v382
        %v384 = vpop.f32.mrb[0].mxu0
        %385 = vdwg.mxu0
        %v386 = vmul.f32 %v356, %v356
        %v387 = vmul.f32 %v359, %v359
        %v388 = vmul.f32 %v364, %v364
        %v389 = vmul.f32 %v367, %v367
        %v390 = vmul.f32 %v372, %v372
        %v391 = vmul.f32 %v375, %v375
        %v392 = vmul.f32 %v380, %v380
        %v393 = vmul.f32 %v383, %v383
        %v394 = vsel %vm301, %v386, 0.0
        %395 = vadd.xlane.f32.xlu0 %v394
        %v396 = vpop.xlane.xlu0 %395
        %v397 = vsel %vm301, %v387, 0.0
        %398 = vadd.xlane.f32.xlu0 %v397
        %v399 = vpop.xlane.xlu0 %398
        %v400 = vsel %vm301, %v388, 0.0
        %401 = vadd.xlane.f32.xlu0 %v400
        %v402 = vpop.xlane.xlu0 %401
        %v403 = vsel %vm301, %v389, 0.0
        %404 = vadd.xlane.f32.xlu0 %v403
        %v405 = vpop.xlane.xlu0 %404
        %v406 = vsel %vm301, %v390, 0.0
        %407 = vadd.xlane.f32.xlu0 %v406
        %v408 = vpop.xlane.xlu0 %407
        %v409 = vsel %vm301, %v391, 0.0
        %410 = vadd.xlane.f32.xlu0 %v409
        %v411 = vpop.xlane.xlu0 %410
        %v412 = vsel %vm301, %v392, 0.0
        %413 = vadd.xlane.f32.xlu0 %v412
        %v414 = vpop.xlane.xlu0 %413
        %v415 = vsel %vm301, %v393, 0.0
        %416 = vadd.xlane.f32.xlu0 %v415
        %v417 = vpop.xlane.xlu0 %416
        %v418 = vadd.f32 %v396, 1e-30
        %v419 = vadd.f32 %v399, 1e-30
        %v420 = vadd.f32 %v402, 1e-30
        %v421 = vadd.f32 %v405, 1e-30
        %v422 = vadd.f32 %v408, 1e-30
        %v423 = vadd.f32 %v411, 1e-30
        %v424 = vadd.f32 %v414, 1e-30
        %v425 = vadd.f32 %v417, 1e-30
        %v426 = vrsqrt.pop %v418
        %v427 = vrsqrt.pop %v419
        %v428 = vrsqrt.pop %v420
        %v429 = vrsqrt.pop %v421
        %v430 = vrsqrt.pop %v422
        %v431 = vrsqrt.pop %v423
        %v432 = vrsqrt.pop %v424
        %v433 = vrsqrt.pop %v425
        %v434 = vmul.f32 %v356, %v426
        %v435 = vmul.f32 %v359, %v427
        %v436 = vmul.f32 %v364, %v428
        %v437 = vmul.f32 %v367, %v429
        %v438 = vmul.f32 %v372, %v430
        %v439 = vmul.f32 %v375, %v431
        %v440 = vmul.f32 %v380, %v432
        %v441 = vmul.f32 %v383, %v433
        %v442 = vpack.c.bf16 %v435, %v434
        %v443 = vpack.c.bf16 %v437, %v436
        %v444 = vpack.c.bf16 %v439, %v438
        %v445 = vpack.c.bf16 %v441, %v440
        %v446 = vld [vmem:[%s3] sm:$0xf]
        %v447 = vld [vmem:[%s3 + $0x4] sm:$0xf]
        %v448 = vld [vmem:[%s3 + $0x8] sm:$0xf]
        %v449 = vld [vmem:[%s3 + $0xc] sm:$0x3]
        %v454 = vunpack.c.l.b16 %v446
        %v455 = vunpack.c.l.b16 %v447
        %v456 = vunpack.c.l.b16 %v448
        %v457 = vunpack.c.l.b16 %v449
        %v458 = vpack.c.b16 %v455, %v454
        %v459 = vpack.c.b16 %v457, %v456
        %v462 = vsel %vm301, %v442, 0
        %v465 = vsel %vm301, %v443, 0
        %v468 = vsel %vm301, %v444, 0
        %v471 = vsel %vm301, %v445, 0
        %v474 = vand.u32 %v459, %v317
        %476 = vmatprep.subr.bf16.mxu0 0
        %477 = vmatpush1.bf16.msra.mxu0 %v458
        %478 = vmatprep.subr.bf16.mxu0 0
        %479 = vmatpush1.bf16.msra.mxu0 %v474
        %480 = vmatprep.subr.bf16.mxu0 0
        %481 = vmatpush1.bf16.msra.mxu0 0
        %482 = vmatprep.subr.bf16.mxu0 0
        %483 = vmatpush1.bf16.msra.mxu0 0
        %484 = vmatprep.subr.bf16.mxu0 0
        %485 = vmatpush1.bf16.msra.mxu0 0
        %486 = vmatprep.subr.bf16.mxu0 0
        %487 = vmatpush1.bf16.msra.mxu0 0
        %488 = vmatprep.subr.bf16.mxu0 0
        %489 = vmatpush1.bf16.msra.mxu0 0
        %490 = vmatprep.subr.bf16.mxu0 0
        %491 = vmatpush1.bf16.msra.mxu0 0
        %492 = vmatprep.subr.bf16.mxu0 0
        %493 = vmatpush1.bf16.msra.mxu0 0
        %494 = vmatprep.subr.bf16.mxu0 0
        %495 = vmatpush1.bf16.msra.mxu0 0
        %496 = vmatprep.subr.bf16.mxu0 0
        %497 = vmatpush1.bf16.msra.mxu0 0
        %498 = vmatprep.subr.bf16.mxu0 0
        %499 = vmatpush1.bf16.msra.mxu0 0
        %500 = vmatprep.subr.bf16.mxu0 0
        %501 = vmatpush1.bf16.msra.mxu0 0
        %502 = vmatprep.subr.bf16.mxu0 0
        %503 = vmatpush1.bf16.msra.mxu0 0
        %504 = vmatprep.subr.bf16.mxu0 0
        %505 = vmatpush1.bf16.msra.mxu0 0
        %506 = vmatprep.subr.bf16.mxu0 0
        %507 = vmatpush1.bf16.msra.mxu0 0
        %508 = vmatprep.mubr.bf16.mxu0 0
        %509 = vmatmul.mubr.bf16.gmra.mrb[0].mxu0 %v462
        %v510 = vpop.f32.mrb[0].mxu0
        %v511 = vadd.f32 0.0, %v510
        %v512 = vpop.f32.mrb[0].mxu0
        %v513 = vpop.f32.mrb[0].mxu0
        %v514 = vadd.f32 0.0, %v513
        %v515 = vpop.f32.mrb[0].mxu0
        %516 = vmatprep.mubr.bf16.mxu0 0
        %517 = vmatmul.mubr.bf16.gmra.mrb[0].mxu0 %v465
        %v518 = vpop.f32.mrb[0].mxu0
        %v519 = vadd.f32 0.0, %v518
        %v520 = vpop.f32.mrb[0].mxu0
        %v521 = vpop.f32.mrb[0].mxu0
        %v522 = vadd.f32 0.0, %v521
        %v523 = vpop.f32.mrb[0].mxu0
        %524 = vmatprep.mubr.bf16.mxu0 0
        %525 = vmatmul.mubr.bf16.gmra.mrb[0].mxu0 %v468
        %v526 = vpop.f32.mrb[0].mxu0
        %v527 = vadd.f32 0.0, %v526
        %v528 = vpop.f32.mrb[0].mxu0
        %v529 = vpop.f32.mrb[0].mxu0
        %v530 = vadd.f32 0.0, %v529
        %v531 = vpop.f32.mrb[0].mxu0
        %532 = vmatprep.mubr.bf16.mxu0 0
        %533 = vmatmul.mubr.bf16.gmra.mrb[0].mxu0 %v471
        %v534 = vpop.f32.mrb[0].mxu0
        %v535 = vadd.f32 0.0, %v534
        %v536 = vpop.f32.mrb[0].mxu0
        %v537 = vpop.f32.mrb[0].mxu0
        %v538 = vadd.f32 0.0, %v537
        %v539 = vpop.f32.mrb[0].mxu0
        %540 = vdwg.mxu0
        %vm541 = vcmp.gt.f32.partialorder %v511, 0.1
        %vm542 = vcmp.gt.f32.partialorder %v514, 0.1
        %vm543 = vcmp.gt.f32.partialorder %v519, 0.1
        %vm544 = vcmp.gt.f32.partialorder %v522, 0.1
        %vm545 = vcmp.gt.f32.partialorder %v527, 0.1
        %vm546 = vcmp.gt.f32.partialorder %v530, 0.1
        %vm547 = vcmp.gt.f32.partialorder %v535, 0.1
        %vm548 = vcmp.gt.f32.partialorder %v538, 0.1
        %v549 = vsel %vm541, 1, 0
        %v550 = vsel %vm542, 1, 0
        %v551 = vsel %vm543, 1, 0
        %v552 = vsel %vm544, 1, 0
        %v553 = vsel %vm545, 1, 0
        %v554 = vsel %vm546, 1, 0
        %v555 = vsel %vm547, 1, 0
        %v556 = vsel %vm548, 1, 0
        %v557 = vcvt.s32.f32 %v549
        %v558 = vcvt.s32.f32 %v550
        %v559 = vcvt.s32.f32 %v551
        %v560 = vcvt.s32.f32 %v552
        %v561 = vcvt.s32.f32 %v553
        %v562 = vcvt.s32.f32 %v554
        %v563 = vcvt.s32.f32 %v555
        %v564 = vcvt.s32.f32 %v556
        %v565 = vpack.c.bf16 %v558, %v557
        %v566 = vpack.c.bf16 %v560, %v559
        %v567 = vpack.c.bf16 %v562, %v561
        %v568 = vpack.c.bf16 %v564, %v563
        %v569 = vld [vmem:[%s4] sm:$0xf]
        %v570 = vld [vmem:[%s4 + $0x4] sm:$0xf]
        %v573 = vunpack.c.l.b16 %v569
        %v574 = vunpack.c.l.b16 %v570
        %v575 = vpack.c.b16 %v574, %v573
        %vm576 = vcmask 523264
        %v578 = vsel %vm576, %v575, 0
        %580 = vmatprep.subr.bf16.mxu0 0
        %581 = vmatpush1.bf16.msra.mxu0 %v565
        %582 = vmatprep.subr.bf16.mxu0 0
        %583 = vmatpush1.bf16.msra.mxu0 %v566
        %584 = vmatprep.subr.bf16.mxu0 0
        %585 = vmatpush1.bf16.msra.mxu0 %v567
        %586 = vmatprep.subr.bf16.mxu0 0
        %587 = vmatpush1.bf16.msra.mxu0 %v568
        %588 = vmatprep.subr.bf16.mxu0 0
        %589 = vmatpush1.bf16.msra.mxu0 0
        %590 = vmatprep.subr.bf16.mxu0 0
        %591 = vmatpush1.bf16.msra.mxu0 0
        %592 = vmatprep.subr.bf16.mxu0 0
        %593 = vmatpush1.bf16.msra.mxu0 0
        %594 = vmatprep.subr.bf16.mxu0 0
        %595 = vmatpush1.bf16.msra.mxu0 0
        %596 = vmatprep.subr.bf16.mxu0 0
        %597 = vmatpush1.bf16.msra.mxu0 0
        %598 = vmatprep.subr.bf16.mxu0 0
        %599 = vmatpush1.bf16.msra.mxu0 0
        %600 = vmatprep.subr.bf16.mxu0 0
        %601 = vmatpush1.bf16.msra.mxu0 0
        %602 = vmatprep.subr.bf16.mxu0 0
        %603 = vmatpush1.bf16.msra.mxu0 0
        %604 = vmatprep.subr.bf16.mxu0 0
        %605 = vmatpush1.bf16.msra.mxu0 0
        %606 = vmatprep.subr.bf16.mxu0 0
        %607 = vmatpush1.bf16.msra.mxu0 0
        %608 = vmatprep.subr.bf16.mxu0 0
        %609 = vmatpush1.bf16.msra.mxu0 0
        %610 = vmatprep.subr.bf16.mxu0 0
        %611 = vmatpush1.bf16.msra.mxu0 0
        %612 = vmatprep.mubr.bf16.mxu0 0
        %613 = vmatmul.mubr.bf16.gmra.mrb[0].mxu0 %v578
        %v614 = vpop.f32.mrb[0].mxu0
        %v615 = vadd.f32 0.0, %v614
        %v616 = vpop.f32.mrb[0].mxu0
        %v617 = vpop.f32.mrb[0].mxu0
        %v618 = vadd.f32 0.0, %v617
        %v619 = vpop.f32.mrb[0].mxu0
        %620 = vdwg.mxu0
        %v621 = vld [vmem:[%s5] sm:$0xff]
        %v622 = vld [vmem:[%s5 + $0x8] sm:$0xff]
        %624 = vset.pattern.permute.xlu0 0
        %625 = vperm.xlu0 %624, %v621
        %v626 = vpop.permute.xlu0 %625
        %629 = vset.pattern.permute.xlu0 0
        %630 = vperm.xlu0 %629, %v622
        %v631 = vpop.permute.xlu0 %630
        %v633 = vmul.f32 %v615, %v626
        %v634 = vmul.f32 %v618, %v631
        %635 = vst [vmem:[%s244] sm:$0xff] %v633
        %636 = vst [vmem:[%s244 + $0x8] sm:$0xff] %v634
        %s637 = sand.u32 %s159, 1
        %s638 = scalar_lea.sflag [#allocation3], %s637
        %s639 = sand.u32 %s159, 1
        %s640 = smul.addr %s639, 16
        %s641 = scalar_lea.vmem [#allocation2], %s640
        // Predicated region
        $region45: #{tpu_custom_call.1} parent=43 // pred_check
          %p642 = pneg %p169
        $region46: #{tpu_custom_call.1} parent=43 // pred_check_branch
          %644 = sbr.rel (%p642) target = $region48
        $region47: #{tpu_custom_call.1} parent=43 // pred_region
          %s646 = ssub.s32 256, 256
          %647 = vsyncadd %s638, %s646
          %s648 = smul.addr %s20, 2
          %s649 = smul.addr %s648, 128
          %s650 = scalar_lea.hbm %s6, %s649
          %s651 = sshll.u32 %s641, 4
          %s652 = int_to_ptr.vmem [resolvable:$true] %s651
          %657 = dma.vmem_to_hbm [thread:$0]  %s652, 256, %s650, %s638, 128, 128, 8
        $region48: #{tpu_custom_call.1} parent=43 // pred_fallthru
          _
      $region44: #{tpu_custom_call.1} parent=5 // pred_fallthru
        _
      %p658 = scmp.le.s32.totalorder 2, %s15
      // Predicated region
      $region49: #{tpu_custom_call.1} parent=5 // pred_check
        %p659 = pneg %p658
      $region50: #{tpu_custom_call.1} parent=5 // pred_check_branch
        %661 = sbr.rel (%p659) target = $region52
      $region51: #{tpu_custom_call.1} parent=5 // pred_region
        %s662 = ssub.s32 %s15, 2
        // Predicated region
        $region53: #{tpu_custom_call.1} parent=51 // pred_check
          %p663 = pneg %p175
        $region54: #{tpu_custom_call.1} parent=51 // pred_check_branch
          %665 = sbr.rel (%p663) target = $region56
        $region55: #{tpu_custom_call.1} parent=51 // pred_region
          %s666 = sand.u32 %s160, 1
          %s667 = scalar_lea.sflag [#allocation3], %s666
          %s668 = sand.u32 %s160, 1
          %s669 = smul.addr %s668, 16
          %s670 = scalar_lea.vmem [#allocation2], %s669
          %671 = dma.done %s667, 256
        $region56: #{tpu_custom_call.1} parent=51 // pred_fallthru
          _
      $region52: #{tpu_custom_call.1} parent=5 // pred_fallthru
        _
    $region6: #{tpu_custom_call.1} parent=1 // loop_footer
      %s19 = sadd.s32 1, %s15
    $region7: #{tpu_custom_call.1} parent=1 // loop_footer_branch
      %14 = sbr.rel target = $region3
    $region8: #{tpu_custom_call.1} parent=1 // loop_exit
      _
    %672 = vsyncpa [#allocation3], 1
    %s673 = scalar_lea.sflag [#allocation3], 1
    %674 = vsyncpa %s673, 1

</llo_original>
